<compile_context>
chip_gen: v6e
topology: v6e:2x2x1
jax: 0.10.0
libtpu: 0.0.40
codegen_flags: <defaults>
</compile_context>

<pallas_src>
import jax
import jax.numpy as jnp
from jax import lax
from jax.experimental import pallas as pl
from jax.experimental.pallas import tpu as pltpu


# --------------------------------------------------------------------------
# Kernel
# --------------------------------------------------------------------------
def _make_ffn_kernel(tile_k: int, d_ff: int, mask_tail: bool):
    """Kernel factory; tile_k / d_ff / mask_tail are trace-time constants."""

    def kernel(x_ref, w1_ref, b1_ref, w2_ref, b2_ref, o_ref, acc_ref):
        k = pl.program_id(1)

        # First matmul: x (tm, d_model) x W1 slab (tk, d_model), contracting
        # the LAST axis of BOTH operands (PyTorch Linear layout, no wrapper
        # transpose; Mosaic drives this transposed-RHS layout on the MXU
        # natively, no per-step XLU transpose).
        h = lax.dot_general(
            x_ref[...], w1_ref[...],
            dimension_numbers=(((1,), (1,)), ((), ())),
            preferred_element_type=jnp.float32)                 # (tm, tk) f32

        # Bias (resident, f32) + ReLU.  b1 was reshaped to (K_tiles, tile_k)
        # in the wrapper; a dynamic sublane index selects this step's slab.
        h = jnp.maximum(h + b1_ref[pl.ds(k, 1), :], 0.0)

        if mask_tail:
            # Last K slab may run past d_ff: zero the invalid hidden columns
            # of BOTH operands so garbage in the padded block region (which
            # may be NaN/inf from stale VMEM) cannot reach the accumulator.
            col = lax.broadcasted_iota(jnp.int32, (1, tile_k), 1)
            valid = (col + k * tile_k) < d_ff                   # (1, tk)
            h = jnp.where(valid, h, 0.0)
            w2_slab = jnp.where(valid, w2_ref[...], 0).astype(w2_ref.dtype)
        else:
            w2_slab = w2_ref[...]

        # Second matmul: h (tm, tk) x W2 slab (d_model, tk), contracting the
        # last axis of both -> partial (tm, d_model) contribution.
        part = lax.dot_general(
            h.astype(w2_slab.dtype), w2_slab,
            dimension_numbers=(((1,), (1,)), ((), ())),
            preferred_element_type=jnp.float32)                 # (tm, dm) f32

        # No zero-init pass: first K step writes, later steps accumulate.
        @pl.when(k == 0)
        def _():
            acc_ref[...] = part

        @pl.when(k > 0)
        def _():
            acc_ref[...] += part

        @pl.when(k == pl.num_programs(1) - 1)
        def _():
            o_ref[...] = (acc_ref[...] + b2_ref[...]).astype(o_ref.dtype)

    return kernel


# --------------------------------------------------------------------------
# Per-generation VMEM budgeting & tile selection
# --------------------------------------------------------------------------
def _vmem_budget():
    """Return (physical_vmem, vmem_limit_bytes, tile_budget_bytes)."""
    try:
        cap = int(pltpu.get_tpu_info().vmem_capacity_bytes)
    except Exception:
        cap = 64 * 1024 * 1024  # conservative fallback, safe on every chip
    # ~48 MiB on 64 MiB parts (v7x), ~96 MiB on 128 MiB parts (v5e/v6e).
    vmem_limit = min((cap * 3) // 4, 110 * 1024 * 1024)
    tile_budget = int(vmem_limit * 0.85)   # headroom for Mosaic internals
    return cap, vmem_limit, tile_budget


def _pick_k_tile(d_ff, preferred=512):
    """Prefer a 128-aligned divisor of d_ff in [256, preferred]; small d_ff
    stays fully resident (single K step); otherwise a fixed `preferred` slab
    with a masked tail (never a full-d_ff fallback that blows VMEM)."""
    if d_ff <= preferred:
        return d_ff
    for t in range(preferred, 255, -128):      # 512, 384, 256
        if d_ff % t == 0:
            return t
    return preferred                           # masked tail path


def _pick_m_tile(M, d_model, tile_k, x_bytes, w_bytes, out_bytes,
                 budget, force_split):
    """Largest M tile whose working set fits `budget` (double-buffered x/out,
    f32 accumulator, double-buffered W1/W2 slabs).  On 2-TC parts, cap so the
    parallel M axis has at least 2 tiles."""
    m_cap = M
    if force_split and M >= 16:
        m_cap = -(-M // 2)                 # ceil(M/2) -> >= 2 M tiles
        m_cap = -(-m_cap // 8) * 8         # round up to a sublane multiple
    weight_bytes = 2 * 2 * tile_k * d_model * w_bytes   # W1 + W2, 2-buffered
    for tm in (1024, 896, 768, 640, 512, 384, 256, 192, 128, 96, 64, 32, 16, 8):
        tm_eff = min(tm, m_cap)
        per_tile = (2 * tm_eff * d_model * x_bytes        # x tile (2 bufs)
                    + 2 * tm_eff * d_model * out_bytes    # out tile (2 bufs)
                    + tm_eff * d_model * 4)               # f32 accumulator
        if weight_bytes + per_tile <= budget:
            return tm_eff
    return min(8, m_cap)


# --------------------------------------------------------------------------
# Wrapper
# --------------------------------------------------------------------------
def feedforward_pallas(x, w1, b1, w2, b2, *, tile_m=None, tile_k=None,
                       compute_dtype=None):
    """x: (..., d_model); w1: (d_ff, d_model), b1: (d_ff,),
    w2: (d_model, d_ff), b2: (d_model,) -- PyTorch Linear layouts (no wrapper
    transposes).  compute_dtype (e.g. jnp.bfloat16) casts x/W1/W2 for the MXU
    while keeping f32 accumulation and f32 bias math."""
    orig_shape = x.shape
    out_dtype = x.dtype
    d_model = orig_shape[-1]
    d_ff = w1.shape[0]
    x2d = x.reshape(-1, d_model)
    M = x2d.shape[0]

    if compute_dtype is not None:
        x2d = x2d.astype(compute_dtype)
        w1 = w1.astype(compute_dtype)
        w2 = w2.astype(compute_dtype)

    cap, vmem_limit, tile_budget = _vmem_budget()
    force_split = cap <= 64 * 1024 * 1024          # v7x-class part: 2 TCs

    if tile_k is None:
        tile_k = _pick_k_tile(d_ff)
    if d_ff > tile_k and tile_k % 128 != 0:
        raise ValueError("tile_k must be a multiple of 128 when it tiles d_ff")
    n_k = -(-d_ff // tile_k)
    d_ff_pad = n_k * tile_k
    mask_tail = d_ff_pad != d_ff

    if tile_m is None:
        tile_m = _pick_m_tile(M, d_model, tile_k,
                              x2d.dtype.itemsize, w1.dtype.itemsize,
                              jnp.dtype(out_dtype).itemsize,
                              tile_budget, force_split)
    else:
        tile_m = min(tile_m, M)
    grid_m = -(-M // tile_m)
    grid = (grid_m, n_k)

    # Biases: resident, pre-cast to f32 (no per-step astype in the kernel).
    b1_res = b1.astype(jnp.float32)
    if mask_tail:
        b1_res = jnp.pad(b1_res, (0, d_ff_pad - d_ff))
    b1_res = b1_res.reshape(n_k, tile_k)
    b2_res = b2.astype(jnp.float32).reshape(1, d_model)

    # Advisory cost hint: weights are re-streamed once per M tile.
    flops = 4 * M * d_model * d_ff
    w_stream = grid_m * (w1.size * w1.dtype.itemsize
                         + w2.size * w2.dtype.itemsize
                         + b1_res.size * 4 + b2_res.size * 4)
    bytes_accessed = (x2d.size * x2d.dtype.itemsize
                      + M * d_model * jnp.dtype(out_dtype).itemsize
                      + w_stream)
    cost = pl.CostEstimate(flops=flops, transcendentals=0,
                           bytes_accessed=int(bytes_accessed))

    kernel = _make_ffn_kernel(tile_k, d_ff, mask_tail)

    out = pl.pallas_call(
        kernel,
        out_shape=jax.ShapeDtypeStruct((M, d_model), out_dtype),
        grid_spec=pltpu.PrefetchScalarGridSpec(
            num_scalar_prefetch=0,
            grid=grid,
            in_specs=[
                # x tile: constant across k -> resident over the K loop.
                pl.BlockSpec((tile_m, d_model), lambda i, k: (i, 0)),
                # W1 slab: rows [k*tk, (k+1)*tk) of (d_ff, d_model).
                pl.BlockSpec((tile_k, d_model), lambda i, k: (k, 0)),
                # b1: fully resident, (K_tiles, tile_k).
                pl.BlockSpec((n_k, tile_k), lambda i, k: (0, 0)),
                # W2 slab: cols [k*tk, (k+1)*tk) of (d_model, d_ff).
                pl.BlockSpec((d_model, tile_k), lambda i, k: (0, k)),
                # b2: tiny, resident.
                pl.BlockSpec((1, d_model), lambda i, k: (0, 0)),
            ],
            out_specs=pl.BlockSpec((tile_m, d_model), lambda i, k: (i, 0)),
            scratch_shapes=[pltpu.VMEM((tile_m, d_model), jnp.float32)],
        ),
        compiler_params=pltpu.CompilerParams(
            dimension_semantics=("parallel", "arbitrary"),
            vmem_limit_bytes=int(vmem_limit),
        ),
        cost_estimate=cost,
    )(x2d, w1, b1_res, w2, b2_res)

    return out.reshape(orig_shape)


# --------------------------------------------------------------------------
# Test harness
# --------------------------------------------------------------------------
def _init_linear_params(key, out_features, in_features, dtype=jnp.float32):
    # Mirrors nn.Linear's uniform(-1/sqrt(in), 1/sqrt(in)) init.
    kw, kb = jax.random.split(key)
    bound = 1.0 / jnp.sqrt(jnp.asarray(in_features, dtype))
    w = jax.random.uniform(kw, (out_features, in_features), dtype,
                           minval=-bound, maxval=bound)
    b = jax.random.uniform(kb, (out_features,), dtype,
                           minval=-bound, maxval=bound)
    return w, b


if __name__ == "__main__":
    key = jax.random.PRNGKey(0)
    kx, k1, k2 = jax.random.split(key, 3)

    # Test 1: multiple M tiles, multiple K slabs, masked K tail
    # (d_ff=640 has no 128-aligned divisor in [256, 512] -> 512 slab + mask).
    batch, seq, d_model, d_ff = 2, 16, 128, 640
    x = jax.random.normal(kx, (batch, seq, d_model), jnp.float32)
    w1, b1 = _init_linear_params(k1, d_ff, d_model)   # Linear(d_model, d_ff)
    w2, b2 = _init_linear_params(k2, d_model, d_ff)   # Linear(d_ff, d_model)
    ref = jnp.maximum(x @ w1.T + b1, 0.0) @ w2.T + b2

    y = feedforward_pallas(x, w1, b1, w2, b2, tile_m=8)
    y = jax.block_until_ready(y)
    assert y.shape == (batch, seq, d_model)
    assert jnp.allclose(y, ref, atol=2e-3, rtol=2e-3)

    # Test 2: bf16 MXU operands (mixed precision -> loose tolerance vs f32 ref).
    y_bf = feedforward_pallas(x, w1, b1, w2, b2, compute_dtype=jnp.bfloat16)
    y_bf = jax.block_until_ready(y_bf)
    assert y_bf.dtype == x.dtype
    assert jnp.allclose(y_bf, ref, atol=0.15, rtol=0.1)

    # Test 3: tiny non-128-aligned shapes (full-dim blocks, single K step),
    # fully automatic tiling.
    b2_, s2_, dm2, df2 = 2, 8, 32, 64
    x_s = jax.random.normal(kx, (b2_, s2_, dm2), jnp.float32)
    w1s, b1s = _init_linear_params(k1, df2, dm2)
    w2s, b2s = _init_linear_params(k2, dm2, df2)
    y_s = jax.block_until_ready(feedforward_pallas(x_s, w1s, b1s, w2s, b2s))
    ref_s = jnp.maximum(x_s @ w1s.T + b1s, 0.0) @ w2s.T + b2s
    assert jnp.allclose(y_s, ref_s, atol=1e-4, rtol=1e-4)

    print("KERNEL_OK")
</pallas_src>

<mosaic_0001>
module attributes {stable_mosaic.version = 11 : i64} {
  func.func @kernel(%arg0: i32, %arg1: i32, %arg2: memref<8x128xf32, #tpu.memory_space<vmem>>, %arg3: memref<512x128xf32, #tpu.memory_space<vmem>>, %arg4: memref<2x512xf32, #tpu.memory_space<vmem>>, %arg5: memref<128x512xf32, #tpu.memory_space<vmem>>, %arg6: memref<1x128xf32, #tpu.memory_space<vmem>>, %arg7: memref<8x128xf32, #tpu.memory_space<vmem>>, %arg8: memref<8x128xf32, #tpu.memory_space<vmem>>) attributes {dimension_semantics = [#tpu.dimension_semantics<parallel>, #tpu.dimension_semantics<arbitrary>], iteration_bounds = array<i64: 4, 2>, scalar_prefetch = 0 : i64, scratch_operands = 1 : i64, tpu.core_type = #tpu.core_type<tc>, window_params = [{transform_indices = @transform_0, window_bounds = array<i64: 8, 128>}, {transform_indices = @transform_1, window_bounds = array<i64: 512, 128>}, {pipeline_mode = #tpu.pipeline_mode<synchronous>, transform_indices = @transform_2, window_bounds = array<i64: 2, 512>}, {transform_indices = @transform_3, window_bounds = array<i64: 128, 512>}, {pipeline_mode = #tpu.pipeline_mode<synchronous>, transform_indices = @transform_4, window_bounds = array<i64: 1, 128>}, {transform_indices = @transform_5, window_bounds = array<i64: 8, 128>}]} {
    %c0 = arith.constant 0 : index
    %c0_0 = arith.constant 0 : index
    %0 = vector.load %arg2[%c0, %c0_0] : memref<8x128xf32, #tpu.memory_space<vmem>>, vector<8x128xf32>
    %c0_1 = arith.constant 0 : index
    %c0_2 = arith.constant 0 : index
    %1 = vector.load %arg3[%c0_1, %c0_2] : memref<512x128xf32, #tpu.memory_space<vmem>>, vector<512x128xf32>
    %cst = arith.constant dense<0.000000e+00> : vector<8x512xf32>
    %2 = tpu.matmul %0, %1, %cst {dimension_numbers = #tpu.dot_dimension_numbers<[1], [1], [0], [0], [0, 0, 1, 0], [], []>} : vector<8x128xf32>, vector<512x128xf32>, vector<8x512xf32> -> vector<8x512xf32>
    %3 = arith.index_cast %arg1 : i32 to index
    %c0_3 = arith.constant 0 : index
    %4 = vector.load %arg4[%3, %c0_3] : memref<2x512xf32, #tpu.memory_space<vmem>>, vector<1x512xf32>
    %5 = vector.broadcast %4 : vector<1x512xf32> to vector<8x512xf32>
    %6 = arith.addf %2, %5 : vector<8x512xf32>
    %cst_4 = arith.constant 0.000000e+00 : f32
    %7 = vector.broadcast %cst_4 : f32 to vector<8x512xf32>
    %8 = arith.maximumf %6, %7 : vector<8x512xf32>
    %9 = tpu.iota {dimensions = array<i32: 1>} : vector<1x512xi32>
    %c512_i32 = arith.constant 512 : i32
    %10 = arith.muli %arg1, %c512_i32 : i32
    %11 = vector.broadcast %10 : i32 to vector<1x512xi32>
    %12 = arith.addi %9, %11 : vector<1x512xi32>
    %c640_i32 = arith.constant 640 : i32
    %13 = vector.broadcast %c640_i32 : i32 to vector<1x512xi32>
    %14 = arith.cmpi slt, %12, %13 : vector<1x512xi32>
    %cst_5 = arith.constant 0.000000e+00 : f32
    %15 = vector.shape_cast %14 : vector<1x512xi1> to vector<1x512xi1>
    %16 = vector.broadcast %15 : vector<1x512xi1> to vector<8x512xi1>
    %17 = vector.broadcast %cst_5 : f32 to vector<8x512xf32>
    %18 = arith.select %16, %8, %17 : vector<8x512xi1>, vector<8x512xf32>
    %c0_6 = arith.constant 0 : index
    %c0_7 = arith.constant 0 : index
    %19 = vector.load %arg5[%c0_6, %c0_7] : memref<128x512xf32, #tpu.memory_space<vmem>>, vector<128x512xf32>
    %c0_i32 = arith.constant 0 : i32
    %20 = arith.sitofp %c0_i32 : i32 to f32
    %21 = vector.shape_cast %14 : vector<1x512xi1> to vector<1x512xi1>
    %22 = vector.broadcast %21 : vector<1x512xi1> to vector<128x512xi1>
    %23 = vector.broadcast %20 : f32 to vector<128x512xf32>
    %24 = arith.select %22, %19, %23 : vector<128x512xi1>, vector<128x512xf32>
    %cst_8 = arith.constant dense<0.000000e+00> : vector<8x128xf32>
    %25 = tpu.matmul %18, %24, %cst_8 {dimension_numbers = #tpu.dot_dimension_numbers<[1], [1], [0], [0], [0, 0, 1, 0], [], []>} : vector<8x512xf32>, vector<128x512xf32>, vector<8x128xf32> -> vector<8x128xf32>
    %c0_i32_9 = arith.constant 0 : i32
    %26 = arith.cmpi eq, %arg1, %c0_i32_9 : i32
    %27 = arith.extui %26 : i1 to i32
    %c0_i32_10 = arith.constant 0 : i32
    %28 = arith.cmpi ne, %27, %c0_i32_10 : i32
    scf.if %28 {
      %c0_14 = arith.constant 0 : index
      %c0_15 = arith.constant 0 : index
      %35 = vector.load %arg8[%c0_14, %c0_15] : memref<8x128xf32, #tpu.memory_space<vmem>>, vector<8x128xf32>
      tpu.vector_store %arg8[%c0_14, %c0_15], %25 {strides = array<i32>} : memref<8x128xf32, #tpu.memory_space<vmem>>, vector<8x128xf32>,
    } else {
    }
    %c0_i32_11 = arith.constant 0 : i32
    %29 = arith.cmpi sgt, %arg1, %c0_i32_11 : i32
    %30 = arith.extui %29 : i1 to i32
    %c0_i32_12 = arith.constant 0 : i32
    %31 = arith.cmpi ne, %30, %c0_i32_12 : i32
    scf.if %31 {
      %c0_14 = arith.constant 0 : index
      %c0_15 = arith.constant 0 : index
      %35 = vector.load %arg8[%c0_14, %c0_15] : memref<8x128xf32, #tpu.memory_space<vmem>>, vector<8x128xf32>
      %36 = arith.addf %35, %25 : vector<8x128xf32>
      %c0_16 = arith.constant 0 : index
      %c0_17 = arith.constant 0 : index
      %37 = vector.load %arg8[%c0_16, %c0_17] : memref<8x128xf32, #tpu.memory_space<vmem>>, vector<8x128xf32>
      tpu.vector_store %arg8[%c0_16, %c0_17], %36 {strides = array<i32>} : memref<8x128xf32, #tpu.memory_space<vmem>>, vector<8x128xf32>,
    } else {
    }
    %c1_i32 = arith.constant 1 : i32
    %32 = arith.cmpi eq, %arg1, %c1_i32 : i32
    %33 = arith.extui %32 : i1 to i32
    %c0_i32_13 = arith.constant 0 : i32
    %34 = arith.cmpi ne, %33, %c0_i32_13 : i32
    scf.if %34 {
      %c0_14 = arith.constant 0 : index
      %c0_15 = arith.constant 0 : index
      %35 = vector.load %arg8[%c0_14, %c0_15] : memref<8x128xf32, #tpu.memory_space<vmem>>, vector<8x128xf32>
      %c0_16 = arith.constant 0 : index
      %c0_17 = arith.constant 0 : index
      %36 = vector.load %arg6[%c0_16, %c0_17] : memref<1x128xf32, #tpu.memory_space<vmem>>, vector<1x128xf32>
      %37 = vector.broadcast %36 : vector<1x128xf32> to vector<8x128xf32>
      %38 = arith.addf %35, %37 : vector<8x128xf32>
      %c0_18 = arith.constant 0 : index
      %c0_19 = arith.constant 0 : index
      %39 = vector.load %arg7[%c0_18, %c0_19] : memref<8x128xf32, #tpu.memory_space<vmem>>, vector<8x128xf32>
      tpu.vector_store %arg7[%c0_18, %c0_19], %38 {strides = array<i32>} : memref<8x128xf32, #tpu.memory_space<vmem>>, vector<8x128xf32>,
    } else {
    }
    return
  }
  func.func @transform_0(%arg0: i32, %arg1: i32) -> (i32, i32) {
    %c0_i32 = arith.constant 0 : i32
    %c0_i32_0 = arith.constant 0 : i32
    return %arg0, %c0_i32 : i32, i32
  }
  func.func @transform_1(%arg0: i32, %arg1: i32) -> (i32, i32) {
    %c0_i32 = arith.constant 0 : i32
    %c0_i32_0 = arith.constant 0 : i32
    return %arg1, %c0_i32 : i32, i32
  }
  func.func @transform_2(%arg0: i32, %arg1: i32) -> (i32, i32) {
    %c0_i32 = arith.constant 0 : i32
    %c0_i32_0 = arith.constant 0 : i32
    %c0_i32_1 = arith.constant 0 : i32
    return %c0_i32, %c0_i32_0 : i32, i32
  }
  func.func @transform_3(%arg0: i32, %arg1: i32) -> (i32, i32) {
    %c0_i32 = arith.constant 0 : i32
    %c0_i32_0 = arith.constant 0 : i32
    return %c0_i32, %arg1 : i32, i32
  }
  func.func @transform_4(%arg0: i32, %arg1: i32) -> (i32, i32) {
    %c0_i32 = arith.constant 0 : i32
    %c0_i32_0 = arith.constant 0 : i32
    %c0_i32_1 = arith.constant 0 : i32
    return %c0_i32, %c0_i32_0 : i32, i32
  }
  func.func @transform_5(%arg0: i32, %arg1: i32) -> (i32, i32) {
    %c0_i32 = arith.constant 0 : i32
    %c0_i32_0 = arith.constant 0 : i32
    return %arg0, %c0_i32 : i32, i32
  }
}

</mosaic_0001>

<llo_original>
// kernel: tpu_custom_call.1
$region0: #{tpu_custom_call.1}
  #allocation0 [shape = 'u32[]', space=smem, size = 0x4, offset = 0x4, fixed_abs, tag = 'smem constant byte address 0x4 - core index']
  #allocation1 [shape = 'u32[144,128]{1,0:T(1,128)}', space=vmem, size = 0x12000, scoped, tag = 'internal scratch']
  #allocation2 [shape = 'f32[8,128]{1,0:T(8,128)}', space=vmem, size = 0x1000, scoped, tag = 'scratch operand']
  %s0 = inlined_call_operand.hbm [shape: f32[32,128], index: 0, kind: input, shape index: {}]
  %s1 = inlined_call_operand.hbm [shape: f32[640,128], index: 1, kind: input, shape index: {}]
  %s2 = inlined_call_operand.hbm [shape: f32[2,512], index: 2, kind: input, shape index: {}]
  %s3 = inlined_call_operand.hbm [shape: f32[128,640], index: 3, kind: input, shape index: {}]
  %s4 = inlined_call_operand.vmem [shape: f32[1,128], index: 4, kind: input, shape index: {}]
  %s5 = inlined_call_operand.hbm [shape: f32[32,128], index: 5, kind: output, shape index: {}]
  %s6 = sld [smem:[#allocation0]]
  $region81: #{tpu_custom_call.1} parent=0
    _
  %s8 = ssub.s32 1, %s6
  %s9 = scalar_select 0, %s8, %s6
  $region1: #{tpu_custom_call.1} parent=0
    #allocation3 [shape = 'u8[8192]{0}', space=vmem, size = 0x2000, scoped, tag = 'input window, operand 0']
    #allocation4 [shape = 's32[2]{0}', space=sflag, size = 0x8, scoped, tag = 'scoped memory for tpu_custom_call.1']
    #allocation5 [shape = 's32[2]{0}', space=sflag, size = 0x8, scoped, tag = 'scoped memory for tpu_custom_call.1']
    #allocation6 [shape = 'u8[524288]{0}', space=vmem, size = 0x80000, scoped, tag = 'input window, operand 1']
    #allocation7 [shape = 's32[2]{0}', space=sflag, size = 0x8, scoped, tag = 'scoped memory for tpu_custom_call.1']
    #allocation8 [shape = 'u8[4096]{0}', space=vmem, size = 0x1000, scoped, tag = 'input window, operand 2, single buffered']
    #allocation9 [shape = 'u8[524288]{0}', space=vmem, size = 0x80000, scoped, tag = 'input window, operand 3']
    #allocation10 [shape = 's32[2]{0}', space=sflag, size = 0x8, scoped, tag = 'scoped memory for tpu_custom_call.1']
    #allocation11 [shape = 'u8[8192]{0}', space=vmem, size = 0x2000, scoped, tag = 'output window, operand 0']
    %10 = vsyncpa [#allocation4], 0
    %s11 = scalar_lea.sflag [#allocation4], 1
    %12 = vsyncpa %s11, 0
    %13 = vsyncpa [#allocation7], 0
    %s14 = scalar_lea.sflag [#allocation7], 1
    %15 = vsyncpa %s14, 0
    %16 = vsyncpa [#allocation10], 0
    %s17 = scalar_lea.sflag [#allocation10], 1
    %18 = vsyncpa %s17, 0
    %19 = vsyncpa [#allocation5], 0
    %s20 = scalar_lea.sflag [#allocation5], 1
    %21 = vsyncpa %s20, 0
    loop: start=0, step=1, limit=10
    $region2: #{tpu_custom_call.1} parent=1 // loop_pre_header
      _
    $region3: #{tpu_custom_call.1} parent=1 // loop_header
      %s23 = sphi 0, %s27
      %p24 = scmp.ge.s32.totalorder %s23, 10
      %s30 = sphi 0, %s42
      %s31 = sphi 0, %s38
      %s32 = sphi 0, %s30
      %s33 = sphi 0, %s31
      %s34 = sphi 0, %s32
      %s35 = sphi 0, %s33
      %s45 = sphi 0, %s47
      %s48 = sphi 0, %s45
      %s49 = sphi 0, %s48
      %s65 = sphi 0, %s49
      %s71 = sphi 0, %s73
      %s74 = sphi 0, %s71
      %s75 = sphi 0, %s74
      %s91 = sphi 0, %s75
      %s95 = sphi 0, %s95
      %s97 = sphi 0, %s95
      %s98 = sphi 0, %s97
      %s112 = sphi 0, %s98
      %s118 = sphi 0, %s120
      %s121 = sphi 0, %s118
      %s122 = sphi 0, %s121
      %s138 = sphi 0, %s122
      %s142 = sphi 0, %s142
      %s144 = sphi 0, %s142
      %s145 = sphi 0, %s144
      %s159 = sphi 0, %s145
      %s165 = sphi 0, %s167
      %s168 = sphi 0, %s165
      %s169 = sphi 0, %s168
      %s185 = sphi 0, %s169
    $region4: #{tpu_custom_call.1} parent=1 // loop_header_branch
      %26 = sbr.rel (%p24) target = $region8
    $region5: #{tpu_custom_call.1} parent=1 // loop_body
      %s28 = ssub.s32 %s23, 1
      %s29 = ssub.s32 %s23, 2
      %s36 = sadd.s32 1, %s31
      %p37 = scmp.ge.s32.totalorder %s36, 2
      %s38 = scalar_select %p37, 0, %s36
      %s39 = sadd.s32 1, %s30
      %s40 = scalar_select %p37, %s39, %s30
      %p41 = scmp.ge.s32.totalorder %s40, 4
      %s42 = scalar_select %p41, 0, %s40
      %s43 = ssub.s32 %s30, %s42
      %p44 = scmp.eq.s32.totalorder %s43, 0
      %s46 = sadd.s32 %s45, 1
      %s47 = scalar_select %p44, %s45, %s46
      %p50 = pneg %p44
      %p51 = scmp.eq.s32.totalorder %s23, 7
      %p52 = por %p50, %p51
      %p53 = scmp.ne.s32.totalorder %s45, %s48
      %p54 = scmp.eq.s32.totalorder %s23, 0
      %p55 = por %p53, %p54
      %p56 = scmp.ne.s32.totalorder %s45, %s48
      %p57 = scmp.eq.s32.totalorder %s28, 7
      %p58 = por %p56, %p57
      %p59 = scmp.ne.s32.totalorder %s48, %s49
      %p60 = scmp.eq.s32.totalorder %s28, 0
      %p61 = por %p59, %p60
      %p62 = scmp.ne.s32.totalorder %s48, %s49
      %p63 = scmp.eq.s32.totalorder %s29, 7
      %p64 = por %p62, %p63
      %p66 = scmp.ne.s32.totalorder %s49, %s65
      %p67 = scmp.eq.s32.totalorder %s29, 0
      %p68 = por %p66, %p67
      %s69 = ssub.s32 %s31, %s38
      %p70 = scmp.eq.s32.totalorder %s69, 0
      %s72 = sadd.s32 %s71, 1
      %s73 = scalar_select %p70, %s71, %s72
      %p76 = pneg %p70
      %p77 = scmp.eq.s32.totalorder %s23, 7
      %p78 = por %p76, %p77
      %p79 = scmp.ne.s32.totalorder %s71, %s74
      %p80 = scmp.eq.s32.totalorder %s23, 0
      %p81 = por %p79, %p80
      %p82 = scmp.ne.s32.totalorder %s71, %s74
      %p83 = scmp.eq.s32.totalorder %s28, 7
      %p84 = por %p82, %p83
      %p85 = scmp.ne.s32.totalorder %s74, %s75
      %p86 = scmp.eq.s32.totalorder %s28, 0
      %p87 = por %p85, %p86
      %p88 = scmp.ne.s32.totalorder %s74, %s75
      %p89 = scmp.eq.s32.totalorder %s29, 7
      %p90 = por %p88, %p89
      %p92 = scmp.ne.s32.totalorder %s75, %s91
      %p93 = scmp.eq.s32.totalorder %s29, 0
      %p94 = por %p92, %p93
      %s96 = sadd.s32 %s95, 1
      %p99 = scmp.eq.s32.totalorder %s23, 7
      %p100 = scmp.ne.s32.totalorder %s95, %s97
      %p101 = scmp.eq.s32.totalorder %s23, 0
      %p102 = por %p100, %p101
      %p103 = scmp.ne.s32.totalorder %s95, %s97
      %p104 = scmp.eq.s32.totalorder %s28, 7
      %p105 = por %p103, %p104
      %p106 = scmp.ne.s32.totalorder %s97, %s98
      %p107 = scmp.eq.s32.totalorder %s28, 0
      %p108 = por %p106, %p107
      %p109 = scmp.ne.s32.totalorder %s97, %s98
      %p110 = scmp.eq.s32.totalorder %s29, 7
      %p111 = por %p109, %p110
      %p113 = scmp.ne.s32.totalorder %s98, %s112
      %p114 = scmp.eq.s32.totalorder %s29, 0
      %p115 = por %p113, %p114
      %s116 = ssub.s32 %s31, %s38
      %p117 = scmp.eq.s32.totalorder %s116, 0
      %s119 = sadd.s32 %s118, 1
      %s120 = scalar_select %p117, %s118, %s119
      %p123 = pneg %p117
      %p124 = scmp.eq.s32.totalorder %s23, 7
      %p125 = por %p123, %p124
      %p126 = scmp.ne.s32.totalorder %s118, %s121
      %p127 = scmp.eq.s32.totalorder %s23, 0
      %p128 = por %p126, %p127
      %p129 = scmp.ne.s32.totalorder %s118, %s121
      %p130 = scmp.eq.s32.totalorder %s28, 7
      %p131 = por %p129, %p130
      %p132 = scmp.ne.s32.totalorder %s121, %s122
      %p133 = scmp.eq.s32.totalorder %s28, 0
      %p134 = por %p132, %p133
      %p135 = scmp.ne.s32.totalorder %s121, %s122
      %p136 = scmp.eq.s32.totalorder %s29, 7
      %p137 = por %p135, %p136
      %p139 = scmp.ne.s32.totalorder %s122, %s138
      %p140 = scmp.eq.s32.totalorder %s29, 0
      %p141 = por %p139, %p140
      %s143 = sadd.s32 %s142, 1
      %p146 = scmp.eq.s32.totalorder %s23, 7
      %p147 = scmp.ne.s32.totalorder %s142, %s144
      %p148 = scmp.eq.s32.totalorder %s23, 0
      %p149 = por %p147, %p148
      %p150 = scmp.ne.s32.totalorder %s142, %s144
      %p151 = scmp.eq.s32.totalorder %s28, 7
      %p152 = por %p150, %p151
      %p153 = scmp.ne.s32.totalorder %s144, %s145
      %p154 = scmp.eq.s32.totalorder %s28, 0
      %p155 = por %p153, %p154
      %p156 = scmp.ne.s32.totalorder %s144, %s145
      %p157 = scmp.eq.s32.totalorder %s29, 7
      %p158 = por %p156, %p157
      %p160 = scmp.ne.s32.totalorder %s145, %s159
      %p161 = scmp.eq.s32.totalorder %s29, 0
      %p162 = por %p160, %p161
      %s163 = ssub.s32 %s30, %s42
      %p164 = scmp.eq.s32.totalorder %s163, 0
      %s166 = sadd.s32 %s165, 1
      %s167 = scalar_select %p164, %s165, %s166
      %p170 = pneg %p164
      %p171 = scmp.eq.s32.totalorder %s23, 7
      %p172 = por %p170, %p171
      %p173 = scmp.ne.s32.totalorder %s165, %s168
      %p174 = scmp.eq.s32.totalorder %s23, 0
      %p175 = por %p173, %p174
      %p176 = scmp.ne.s32.totalorder %s165, %s168
      %p177 = scmp.eq.s32.totalorder %s28, 7
      %p178 = por %p176, %p177
      %p179 = scmp.ne.s32.totalorder %s168, %s169
      %p180 = scmp.eq.s32.totalorder %s28, 0
      %p181 = por %p179, %p180
      %p182 = scmp.ne.s32.totalorder %s168, %s169
      %p183 = scmp.eq.s32.totalorder %s29, 7
      %p184 = por %p182, %p183
      %p186 = scmp.ne.s32.totalorder %s169, %s185
      %p187 = scmp.eq.s32.totalorder %s29, 0
      %p188 = por %p186, %p187
      %p189 = scmp.le.s32.totalorder 1, %s23
      %p190 = scmp.lt.s32.totalorder %s23, 9
      %p191 = pnand %p189, %p190
      %p192 = pneg %p191
      // Predicated region
      $region9: #{tpu_custom_call.1} parent=5 // pred_check
        _
      $region10: #{tpu_custom_call.1} parent=5 // pred_check_branch
        %194 = sbr.rel (%p191) target = $region12
      $region11: #{tpu_custom_call.1} parent=5 // pred_region
        %s195 = ssub.s32 %s23, 1
        // Predicated region
        $region13: #{tpu_custom_call.1} parent=11 // pred_check
          %p196 = pneg %p108
        $region14: #{tpu_custom_call.1} parent=11 // pred_check_branch
          %198 = sbr.rel (%p196) target = $region16
        $region15: #{tpu_custom_call.1} parent=11 // pred_region
          %s200 = ssub.s32 128, 128
          %201 = vsyncadd [#allocation7], %s200
          %s203 = sshll.u32 [#allocation8], 4
          %s204 = int_to_ptr.vmem [resolvable:$true] %s203
          %206 = dma.hbm_to_vmem [thread:$0]  %s2, 128, %s204, [#allocation7]
        $region16: #{tpu_custom_call.1} parent=11 // pred_fallthru
          _
        // Predicated region
        $region17: #{tpu_custom_call.1} parent=11 // pred_check
          %p207 = pneg %p155
        $region18: #{tpu_custom_call.1} parent=11 // pred_check_branch
          %209 = sbr.rel (%p207) target = $region20
        $region19: #{tpu_custom_call.1} parent=11 // pred_region
          _
        $region20: #{tpu_custom_call.1} parent=11 // pred_fallthru
          _
      $region12: #{tpu_custom_call.1} parent=5 // pred_fallthru
        _
      %p210 = scmp.lt.s32.totalorder %s23, 8
      // Predicated region
      $region21: #{tpu_custom_call.1} parent=5 // pred_check
        %p211 = pneg %p210
      $region22: #{tpu_custom_call.1} parent=5 // pred_check_branch
        %213 = sbr.rel (%p211) target = $region24
      $region23: #{tpu_custom_call.1} parent=5 // pred_region
        // Predicated region
        $region25: #{tpu_custom_call.1} parent=23 // pred_check
          %p214 = pneg %p55
        $region26: #{tpu_custom_call.1} parent=23 // pred_check_branch
          %216 = sbr.rel (%p214) target = $region28
        $region27: #{tpu_custom_call.1} parent=23 // pred_region
          %s217 = sand.u32 %s45, 1
          %s218 = scalar_lea.sflag [#allocation4], %s217
          %s219 = sand.u32 %s45, 1
          %s220 = smul.addr %s219, 8
          %s221 = scalar_lea.vmem [#allocation3], %s220
          %s223 = ssub.s32 128, 128
          %224 = vsyncadd %s218, %s223
          %s225 = smul.addr %s30, 128
          %s226 = scalar_lea.hbm %s0, %s225
          %s228 = sshll.u32 %s221, 4
          %s229 = int_to_ptr.vmem [resolvable:$true] %s228
          %231 = dma.hbm_to_vmem [thread:$0]  %s226, 128, %s229, %s218
        $region28: #{tpu_custom_call.1} parent=23 // pred_fallthru
          _
        // Predicated region
        $region29: #{tpu_custom_call.1} parent=23 // pred_check
          %p232 = pneg %p81
        $region30: #{tpu_custom_call.1} parent=23 // pred_check_branch
          %234 = sbr.rel (%p232) target = $region32
        $region31: #{tpu_custom_call.1} parent=23 // pred_region
          %s235 = sand.u32 %s23, 1
          %s236 = scalar_lea.sflag [#allocation7], %s235
          %s237 = sand.u32 %s71, 1
          %s238 = smul.addr %s237, 512
          %s239 = scalar_lea.vmem [#allocation6], %s238
          %s240 = smul.u32 64, %s31
          %s241 = ssub.s32 80, %s240
          %p242 = scmp.lt.s32.totalorder %s241, 64
          %s243 = scalar_select %p242, %s241, 64
          %s244 = smul.u32 128, %s243
          %s246 = ssub.s32 8192, %s244
          %247 = vsyncadd %s236, %s246
          %p248 = scmp.ne.s32.totalorder 0, %s244
          %s249 = smul.addr %s240, 128
          %s250 = scalar_lea.hbm %s1, %s249
          %s251 = smul.u32 8, %s243
          %s252 = sshll.u32 %s239, 4
          %s253 = int_to_ptr.vmem [resolvable:$true] %s252
          %s254 = sshll.u32 %s251, 4
          %258 = dma.hbm_to_vmem [thread:$0]  (%p248), %s250, %s254, %s253, %s236, 128, 128, 8
        $region32: #{tpu_custom_call.1} parent=23 // pred_fallthru
          _
        // Predicated region
        $region33: #{tpu_custom_call.1} parent=23 // pred_check
          %p259 = pneg %p128
        $region34: #{tpu_custom_call.1} parent=23 // pred_check_branch
          %261 = sbr.rel (%p259) target = $region36
        $region35: #{tpu_custom_call.1} parent=23 // pred_region
          %s262 = sand.u32 %s118, 1
          %s263 = scalar_lea.sflag [#allocation10], %s262
          %s264 = sand.u32 %s118, 1
          %s265 = smul.addr %s264, 512
          %s266 = scalar_lea.vmem [#allocation9], %s265
          %s267 = smul.u32 4, %s31
          %s268 = ssub.s32 5, %s267
          %p269 = scmp.lt.s32.totalorder %s268, 4
          %s270 = scalar_select %p269, %s268, 4
          %s271 = smul.u32 2048, %s270
          %s273 = ssub.s32 8192, %s271
          %274 = vsyncadd %s263, %s273
          %p275 = scmp.ne.s32.totalorder 0, %s271
          %s276 = smul.addr %s267, 128
          %s277 = scalar_lea.hbm %s3, %s276
          %s278 = smul.u32 %s270, 8
          %s279 = smul.u32 %s278, 16
          %s280 = sshll.u32 %s266, 4
          %s281 = int_to_ptr.vmem [resolvable:$true] %s280
          %s282 = sshll.u32 %s279, 4
          %286 = dma.hbm_to_vmem [thread:$0]  (%p275), %s277, %s282, %s281, %s263, 640, 512, %s278
        $region36: #{tpu_custom_call.1} parent=23 // pred_fallthru
          _
      $region24: #{tpu_custom_call.1} parent=5 // pred_fallthru
        _
      %p287 = scmp.le.s32.totalorder 1, %s23
      %p288 = scmp.lt.s32.totalorder %s23, 9
      %p289 = pnand %p287, %p288
      %p290 = pneg %p289
      // Predicated region
      $region37: #{tpu_custom_call.1} parent=5 // pred_check
        _
      $region38: #{tpu_custom_call.1} parent=5 // pred_check_branch
        %292 = sbr.rel (%p289) target = $region40
      $region39: #{tpu_custom_call.1} parent=5 // pred_region
        %s293 = ssub.s32 %s23, 1
        %s294 = sand.u32 %s48, 1
        %s295 = scalar_lea.sflag [#allocation4], %s294
        %s296 = sand.u32 %s48, 1
        %s297 = smul.addr %s296, 8
        %s298 = scalar_lea.vmem [#allocation3], %s297
        // Predicated region
        $region41: #{tpu_custom_call.1} parent=39 // pred_check
          %p299 = pneg %p61
        $region42: #{tpu_custom_call.1} parent=39 // pred_check_branch
          %301 = sbr.rel (%p299) target = $region44
        $region43: #{tpu_custom_call.1} parent=39 // pred_region
          %302 = dma.done %s295, 128
        $region44: #{tpu_custom_call.1} parent=39 // pred_fallthru
          _
        %s303 = sand.u32 %s28, 1
        %s304 = scalar_lea.sflag [#allocation7], %s303
        %s305 = sand.u32 %s74, 1
        %s306 = smul.addr %s305, 512
        %s307 = scalar_lea.vmem [#allocation6], %s306
        // Predicated region
        $region45: #{tpu_custom_call.1} parent=39 // pred_check
          %p308 = pneg %p87
        $region46: #{tpu_custom_call.1} parent=39 // pred_check_branch
          %310 = sbr.rel (%p308) target = $region48
        $region47: #{tpu_custom_call.1} parent=39 // pred_region
          %311 = dma.done %s304, 8192
        $region48: #{tpu_custom_call.1} parent=39 // pred_fallthru
          _
        // Predicated region
        $region49: #{tpu_custom_call.1} parent=39 // pred_check
          %p312 = pneg %p108
        $region50: #{tpu_custom_call.1} parent=39 // pred_check_branch
          %314 = sbr.rel (%p312) target = $region52
        $region51: #{tpu_custom_call.1} parent=39 // pred_region
          %315 = dma.done [#allocation7], 128
        $region52: #{tpu_custom_call.1} parent=39 // pred_fallthru
          _
        %s316 = sand.u32 %s121, 1
        %s317 = scalar_lea.sflag [#allocation10], %s316
        %s318 = sand.u32 %s121, 1
        %s319 = smul.addr %s318, 512
        %s320 = scalar_lea.vmem [#allocation9], %s319
        // Predicated region
        $region53: #{tpu_custom_call.1} parent=39 // pred_check
          %p321 = pneg %p134
        $region54: #{tpu_custom_call.1} parent=39 // pred_check_branch
          %323 = sbr.rel (%p321) target = $region56
        $region55: #{tpu_custom_call.1} parent=39 // pred_region
          %324 = dma.done %s317, 8192
        $region56: #{tpu_custom_call.1} parent=39 // pred_fallthru
          _
        %s325 = sand.u32 %s48, 1
        %s326 = scalar_lea.sflag [#allocation4], %s325
        %s327 = sand.u32 %s48, 1
        %s328 = smul.addr %s327, 8
        %s329 = scalar_lea.vmem [#allocation3], %s328
        %p330 = pneg %p61
        %p331 = pneg %p58
        %s332 = sand.u32 %s28, 1
        %s333 = scalar_lea.sflag [#allocation7], %s332
        %s334 = sand.u32 %s74, 1
        %s335 = smul.addr %s334, 512
        %s336 = scalar_lea.vmem [#allocation6], %s335
        %p337 = pneg %p87
        %p338 = pneg %p84
        %p339 = pneg %p108
        %p340 = pneg %p105
        %s341 = sand.u32 %s121, 1
        %s342 = scalar_lea.sflag [#allocation10], %s341
        %s343 = sand.u32 %s121, 1
        %s344 = smul.addr %s343, 512
        %s345 = scalar_lea.vmem [#allocation9], %s344
        %p346 = pneg %p134
        %p347 = pneg %p131
        %p348 = pneg %p155
        %p349 = pneg %p152
        %p350 = pneg %p181
        %p351 = pneg %p178
        %s352 = sand.u32 %s168, 1
        %s353 = scalar_lea.sflag [#allocation5], %s352
        %s354 = sand.u32 %s168, 1
        %s355 = smul.addr %s354, 8
        %s356 = scalar_lea.vmem [#allocation11], %s355
        %s357 = smul.u32 64, %s33
        %s358 = ssub.s32 80, %s357
        %p359 = scmp.lt.s32.totalorder %s358, 64
        %s360 = scalar_select %p359, %s358, 64
        %s361 = smul.u32 128, %s360
        %s362 = smul.u32 4, %s33
        %s363 = ssub.s32 5, %s362
        %p364 = scmp.lt.s32.totalorder %s363, 4
        %s365 = scalar_select %p364, %s363, 4
        %s366 = smul.u32 2048, %s365
        %v367 = vld [vmem:[%s298] sm:$0xff]
        %v368 = vld [vmem:[%s307] sm:$0xff]
        %v369 = vld [vmem:[%s307 + $0x8] sm:$0xff]
        %v370 = vld [vmem:[%s307 + $0x10] sm:$0xff]
        %v371 = vld [vmem:[%s307 + $0x18] sm:$0xff]
        %v372 = vld [vmem:[%s307 + $0x20] sm:$0xff]
        %v373 = vld [vmem:[%s307 + $0x28] sm:$0xff]
        %v374 = vld [vmem:[%s307 + $0x30] sm:$0xff]
        %v375 = vld [vmem:[%s307 + $0x38] sm:$0xff]
        %v376 = vld [vmem:[%s307 + $0x40] sm:$0xff]
        %v377 = vld [vmem:[%s307 + $0x48] sm:$0xff]
        %v378 = vld [vmem:[%s307 + $0x50] sm:$0xff]
        %v379 = vld [vmem:[%s307 + $0x58] sm:$0xff]
        %v380 = vld [vmem:[%s307 + $0x60] sm:$0xff]
        %v381 = vld [vmem:[%s307 + $0x68] sm:$0xff]
        %v382 = vld [vmem:[%s307 + $0x70] sm:$0xff]
        %v383 = vld [vmem:[%s307 + $0x78] sm:$0xff]
        %v384 = vld [vmem:[%s307 + $0x80] sm:$0xff]
        %v385 = vld [vmem:[%s307 + $0x88] sm:$0xff]
        %v386 = vld [vmem:[%s307 + $0x90] sm:$0xff]
        %v387 = vld [vmem:[%s307 + $0x98] sm:$0xff]
        %v388 = vld [vmem:[%s307 + $0xa0] sm:$0xff]
        %v389 = vld [vmem:[%s307 + $0xa8] sm:$0xff]
        %v390 = vld [vmem:[%s307 + $0xb0] sm:$0xff]
        %v391 = vld [vmem:[%s307 + $0xb8] sm:$0xff]
        %v392 = vld [vmem:[%s307 + $0xc0] sm:$0xff]
        %v393 = vld [vmem:[%s307 + $0xc8] sm:$0xff]
        %v394 = vld [vmem:[%s307 + $0xd0] sm:$0xff]
        %v395 = vld [vmem:[%s307 + $0xd8] sm:$0xff]
        %v396 = vld [vmem:[%s307 + $0xe0] sm:$0xff]
        %v397 = vld [vmem:[%s307 + $0xe8] sm:$0xff]
        %v398 = vld [vmem:[%s307 + $0xf0] sm:$0xff]
        %v399 = vld [vmem:[%s307 + $0xf8] sm:$0xff]
        %v400 = vld [vmem:[%s307 + $0x100] sm:$0xff]
        %v401 = vld [vmem:[%s307 + $0x108] sm:$0xff]
        %v402 = vld [vmem:[%s307 + $0x110] sm:$0xff]
        %v403 = vld [vmem:[%s307 + $0x118] sm:$0xff]
        %v404 = vld [vmem:[%s307 + $0x120] sm:$0xff]
        %v405 = vld [vmem:[%s307 + $0x128] sm:$0xff]
        %v406 = vld [vmem:[%s307 + $0x130] sm:$0xff]
        %v407 = vld [vmem:[%s307 + $0x138] sm:$0xff]
        %v408 = vld [vmem:[%s307 + $0x140] sm:$0xff]
        %v409 = vld [vmem:[%s307 + $0x148] sm:$0xff]
        %v410 = vld [vmem:[%s307 + $0x150] sm:$0xff]
        %v411 = vld [vmem:[%s307 + $0x158] sm:$0xff]
        %v412 = vld [vmem:[%s307 + $0x160] sm:$0xff]
        %v413 = vld [vmem:[%s307 + $0x168] sm:$0xff]
        %v414 = vld [vmem:[%s307 + $0x170] sm:$0xff]
        %v415 = vld [vmem:[%s307 + $0x178] sm:$0xff]
        %v416 = vld [vmem:[%s307 + $0x180] sm:$0xff]
        %v417 = vld [vmem:[%s307 + $0x188] sm:$0xff]
        %v418 = vld [vmem:[%s307 + $0x190] sm:$0xff]
        %v419 = vld [vmem:[%s307 + $0x198] sm:$0xff]
        %v420 = vld [vmem:[%s307 + $0x1a0] sm:$0xff]
        %v421 = vld [vmem:[%s307 + $0x1a8] sm:$0xff]
        %v422 = vld [vmem:[%s307 + $0x1b0] sm:$0xff]
        %v423 = vld [vmem:[%s307 + $0x1b8] sm:$0xff]
        %v424 = vld [vmem:[%s307 + $0x1c0] sm:$0xff]
        %v425 = vld [vmem:[%s307 + $0x1c8] sm:$0xff]
        %v426 = vld [vmem:[%s307 + $0x1d0] sm:$0xff]
        %v427 = vld [vmem:[%s307 + $0x1d8] sm:$0xff]
        %v428 = vld [vmem:[%s307 + $0x1e0] sm:$0xff]
        %v429 = vld [vmem:[%s307 + $0x1e8] sm:$0xff]
        %v430 = vld [vmem:[%s307 + $0x1f0] sm:$0xff]
        %v431 = vld [vmem:[%s307 + $0x1f8] sm:$0xff]
        %s432 = sshra.s32 %s33, 1
        %s433 = sand.u32 %s33, 1
        %s434 = sshra.s32 %s33, 1
        %s435 = sand.u32 %s33, 1
        %s436 = smul.u32 %s432, 4
        %s437 = smul.u32 %s436, 2
        %s438 = sadd.s32 %s437, %s435
        %s439 = scalar_lea.vmem [#allocation8], %s438
        %v440 = vld [vmem:[%s439] ss:$2 sm:$0xf]
        %v442 = vlaneseq
        %v443 = vshrl.u32 %v442, 7
        %v444 = vsub.s32 0, %v443
        %v445 = vrot.slane %v440, %v444
        %v446 = vlaneseq
        %v447 = vshrl.u32 %v446, 7
        %v448 = vsub.s32 1, %v447
        %v449 = vrot.slane %v440, %v448
        %v450 = vlaneseq
        %v451 = vshrl.u32 %v450, 7
        %v452 = vsub.s32 2, %v451
        %v453 = vrot.slane %v440, %v452
        %v454 = vlaneseq
        %v455 = vshrl.u32 %v454, 7
        %v456 = vsub.s32 3, %v455
        %v457 = vrot.slane %v440, %v456
        %462 = vmatprep.subr.mxu0 0.0
        %463 = vmatpush1.xpose.msra.mxu0 %v383
        %464 = vmatprep.subr.mxu0 0.0
        %465 = vmatpush1.xpose.msra.mxu0 %v382
        %466 = vmatprep.subr.mxu0 0.0
        %467 = vmatpush1.xpose.msra.mxu0 %v381
        %468 = vmatprep.subr.mxu0 0.0
        %469 = vmatpush1.xpose.msra.mxu0 %v380
        %470 = vmatprep.subr.mxu0 0.0
        %471 = vmatpush1.xpose.msra.mxu0 %v379
        %472 = vmatprep.subr.mxu0 0.0
        %473 = vmatpush1.xpose.msra.mxu0 %v378
        %474 = vmatprep.subr.mxu0 0.0
        %475 = vmatpush1.xpose.msra.mxu0 %v377
        %476 = vmatprep.subr.mxu0 0.0
        %477 = vmatpush1.xpose.msra.mxu0 %v376
        %478 = vmatprep.subr.mxu0 0.0
        %479 = vmatpush1.xpose.msra.mxu0 %v375
        %480 = vmatprep.subr.mxu0 0.0
        %481 = vmatpush1.xpose.msra.mxu0 %v374
        %482 = vmatprep.subr.mxu0 0.0
        %483 = vmatpush1.xpose.msra.mxu0 %v373
        %484 = vmatprep.subr.mxu0 0.0
        %485 = vmatpush1.xpose.msra.mxu0 %v372
        %486 = vmatprep.subr.mxu0 0.0
        %487 = vmatpush1.xpose.msra.mxu0 %v371
        %488 = vmatprep.subr.mxu0 0.0
        %489 = vmatpush1.xpose.msra.mxu0 %v370
        %490 = vmatprep.subr.mxu0 0.0
        %491 = vmatpush1.xpose.msra.mxu0 %v369
        %492 = vmatprep.subr.mxu0 0.0
        %493 = vmatpush1.xpose.msra.mxu0 %v368
        %494 = vmatprep.subr.mxu0 0.0
        %495 = vmatpush2.xpose.msra.mxu0 %v399
        %496 = vmatprep.subr.mxu0 0.0
        %497 = vmatpush2.xpose.msra.mxu0 %v398
        %498 = vmatprep.subr.mxu0 0.0
        %499 = vmatpush2.xpose.msra.mxu0 %v397
        %500 = vmatprep.subr.mxu0 0.0
        %501 = vmatpush2.xpose.msra.mxu0 %v396
        %502 = vmatprep.subr.mxu0 0.0
        %503 = vmatpush2.xpose.msra.mxu0 %v395
        %504 = vmatprep.subr.mxu0 0.0
        %505 = vmatpush2.xpose.msra.mxu0 %v394
        %506 = vmatprep.subr.mxu0 0.0
        %507 = vmatpush2.xpose.msra.mxu0 %v393
        %508 = vmatprep.subr.mxu0 0.0
        %509 = vmatpush2.xpose.msra.mxu0 %v392
        %510 = vmatprep.subr.mxu0 0.0
        %511 = vmatpush2.xpose.msra.mxu0 %v391
        %512 = vmatprep.subr.mxu0 0.0
        %513 = vmatpush2.xpose.msra.mxu0 %v390
        %514 = vmatprep.subr.mxu0 0.0
        %515 = vmatpush2.xpose.msra.mxu0 %v389
        %516 = vmatprep.subr.mxu0 0.0
        %517 = vmatpush2.xpose.msra.mxu0 %v388
        %518 = vmatprep.subr.mxu0 0.0
        %519 = vmatpush2.xpose.msra.mxu0 %v387
        %520 = vmatprep.subr.mxu0 0.0
        %521 = vmatpush2.xpose.msra.mxu0 %v386
        %522 = vmatprep.subr.mxu0 0.0
        %523 = vmatpush2.xpose.msra.mxu0 %v385
        %524 = vmatprep.subr.mxu0 0.0
        %525 = vmatpush2.xpose.msra.mxu0 %v384
        %526 = vmatprep.mubr.f32.mxu0 0.0
        %527 = vmatmul.mubr.f32.gmra.mxu0 %v367
        %v528 = vpop.f32.mrf.mxu0
        %v529 = vadd.f32 %v445, %v528
        %v530 = vpop.f32.mrf.mxu0
        %v531 = vadd.f32 %v449, %v530
        %532 = vdwg.mxu0
        %533 = vmatprep.subr.mxu0 0.0
        %534 = vmatpush1.xpose.msra.mxu0 %v415
        %535 = vmatprep.subr.mxu0 0.0
        %536 = vmatpush1.xpose.msra.mxu0 %v414
        %537 = vmatprep.subr.mxu0 0.0
        %538 = vmatpush1.xpose.msra.mxu0 %v413
        %539 = vmatprep.subr.mxu0 0.0
        %540 = vmatpush1.xpose.msra.mxu0 %v412
        %541 = vmatprep.subr.mxu0 0.0
        %542 = vmatpush1.xpose.msra.mxu0 %v411
        %543 = vmatprep.subr.mxu0 0.0
        %544 = vmatpush1.xpose.msra.mxu0 %v410
        %545 = vmatprep.subr.mxu0 0.0
        %546 = vmatpush1.xpose.msra.mxu0 %v409
        %547 = vmatprep.subr.mxu0 0.0
        %548 = vmatpush1.xpose.msra.mxu0 %v408
        %549 = vmatprep.subr.mxu0 0.0
        %550 = vmatpush1.xpose.msra.mxu0 %v407
        %551 = vmatprep.subr.mxu0 0.0
        %552 = vmatpush1.xpose.msra.mxu0 %v406
        %553 = vmatprep.subr.mxu0 0.0
        %554 = vmatpush1.xpose.msra.mxu0 %v405
        %555 = vmatprep.subr.mxu0 0.0
        %556 = vmatpush1.xpose.msra.mxu0 %v404
        %557 = vmatprep.subr.mxu0 0.0
        %558 = vmatpush1.xpose.msra.mxu0 %v403
        %559 = vmatprep.subr.mxu0 0.0
        %560 = vmatpush1.xpose.msra.mxu0 %v402
        %561 = vmatprep.subr.mxu0 0.0
        %562 = vmatpush1.xpose.msra.mxu0 %v401
        %563 = vmatprep.subr.mxu0 0.0
        %564 = vmatpush1.xpose.msra.mxu0 %v400
        %565 = vmatprep.subr.mxu0 0.0
        %566 = vmatpush2.xpose.msra.mxu0 %v431
        %567 = vmatprep.subr.mxu0 0.0
        %568 = vmatpush2.xpose.msra.mxu0 %v430
        %569 = vmatprep.subr.mxu0 0.0
        %570 = vmatpush2.xpose.msra.mxu0 %v429
        %571 = vmatprep.subr.mxu0 0.0
        %572 = vmatpush2.xpose.msra.mxu0 %v428
        %573 = vmatprep.subr.mxu0 0.0
        %574 = vmatpush2.xpose.msra.mxu0 %v427
        %575 = vmatprep.subr.mxu0 0.0
        %576 = vmatpush2.xpose.msra.mxu0 %v426
        %577 = vmatprep.subr.mxu0 0.0
        %578 = vmatpush2.xpose.msra.mxu0 %v425
        %579 = vmatprep.subr.mxu0 0.0
        %580 = vmatpush2.xpose.msra.mxu0 %v424
        %581 = vmatprep.subr.mxu0 0.0
        %582 = vmatpush2.xpose.msra.mxu0 %v423
        %583 = vmatprep.subr.mxu0 0.0
        %584 = vmatpush2.xpose.msra.mxu0 %v422
        %585 = vmatprep.subr.mxu0 0.0
        %586 = vmatpush2.xpose.msra.mxu0 %v421
        %587 = vmatprep.subr.mxu0 0.0
        %588 = vmatpush2.xpose.msra.mxu0 %v420
        %589 = vmatprep.subr.mxu0 0.0
        %590 = vmatpush2.xpose.msra.mxu0 %v419
        %591 = vmatprep.subr.mxu0 0.0
        %592 = vmatpush2.xpose.msra.mxu0 %v418
        %593 = vmatprep.subr.mxu0 0.0
        %594 = vmatpush2.xpose.msra.mxu0 %v417
        %595 = vmatprep.subr.mxu0 0.0
        %596 = vmatpush2.xpose.msra.mxu0 %v416
        %597 = vmatprep.mubr.f32.mxu0 0.0
        %598 = vmatmul.mubr.f32.gmra.mxu0 %v367
        %v599 = vpop.f32.mrf.mxu0
        %v600 = vadd.f32 %v453, %v599
        %v601 = vpop.f32.mrf.mxu0
        %v602 = vadd.f32 %v457, %v601
        %603 = vdwg.mxu0
        %v604 = vmax.f32 %v529, 0.0
        %v605 = vmax.f32 %v531, 0.0
        %v606 = vmax.f32 %v600, 0.0
        %v607 = vmax.f32 %v602, 0.0
        %v608 = vlaneseq
        %v609 = vand.u32 %v608, 127
        %v610 = vadd.s32 %v609, 128
        %v611 = vadd.s32 %v609, 256
        %v612 = vadd.s32 %v609, 384
        %s613 = smul.u32 %s33, 512
        %v614 = vstv %s613
        %v615 = vadd.s32 %v609, %v614
        %v616 = vadd.s32 %v610, %v614
        %v617 = vadd.s32 %v611, %v614
        %v618 = vadd.s32 %v612, %v614
        %vm619 = vcmp.lt.s32.totalorder %v615, 640
        %vm620 = vcmp.lt.s32.totalorder %v616, 640
        %vm621 = vcmp.lt.s32.totalorder %v617, 640
        %vm622 = vcmp.lt.s32.totalorder %v618, 640
        %v623 = vsel %vm619, 1, 0
        %v624 = vsel %vm620, 1, 0
        %v625 = vsel %vm621, 1, 0
        %v626 = vsel %vm622, 1, 0
        %vm627 = vcmp.eq.s32.totalorder %v623, 1
        %vm628 = vcmp.eq.s32.totalorder %v624, 1
        %vm629 = vcmp.eq.s32.totalorder %v625, 1
        %vm630 = vcmp.eq.s32.totalorder %v626, 1
        %v631 = vsel %vm627, %v604, 0.0
        %v632 = vsel %vm628, %v605, 0.0
        %v633 = vsel %vm629, %v606, 0.0
        %v634 = vsel %vm630, %v607, 0.0
        %v635 = vld [vmem:[%s320] sm:$0xff]
        %v636 = vld [vmem:[%s320 + $0x8] sm:$0xff]
        %v637 = vld [vmem:[%s320 + $0x10] sm:$0xff]
        %v638 = vld [vmem:[%s320 + $0x18] sm:$0xff]
        %v639 = vld [vmem:[%s320 + $0x20] sm:$0xff]
        %v640 = vld [vmem:[%s320 + $0x28] sm:$0xff]
        %v641 = vld [vmem:[%s320 + $0x30] sm:$0xff]
        %v642 = vld [vmem:[%s320 + $0x38] sm:$0xff]
        %v643 = vld [vmem:[%s320 + $0x40] sm:$0xff]
        %v644 = vld [vmem:[%s320 + $0x48] sm:$0xff]
        %v645 = vld [vmem:[%s320 + $0x50] sm:$0xff]
        %v646 = vld [vmem:[%s320 + $0x58] sm:$0xff]
        %v647 = vld [vmem:[%s320 + $0x60] sm:$0xff]
        %v648 = vld [vmem:[%s320 + $0x68] sm:$0xff]
        %v649 = vld [vmem:[%s320 + $0x70] sm:$0xff]
        %v650 = vld [vmem:[%s320 + $0x78] sm:$0xff]
        %v651 = vld [vmem:[%s320 + $0x80] sm:$0xff]
        %v652 = vld [vmem:[%s320 + $0x88] sm:$0xff]
        %v653 = vld [vmem:[%s320 + $0x90] sm:$0xff]
        %v654 = vld [vmem:[%s320 + $0x98] sm:$0xff]
        %v655 = vld [vmem:[%s320 + $0xa0] sm:$0xff]
        %v656 = vld [vmem:[%s320 + $0xa8] sm:$0xff]
        %v657 = vld [vmem:[%s320 + $0xb0] sm:$0xff]
        %v658 = vld [vmem:[%s320 + $0xb8] sm:$0xff]
        %v659 = vld [vmem:[%s320 + $0xc0] sm:$0xff]
        %v660 = vld [vmem:[%s320 + $0xc8] sm:$0xff]
        %v661 = vld [vmem:[%s320 + $0xd0] sm:$0xff]
        %v662 = vld [vmem:[%s320 + $0xd8] sm:$0xff]
        %v663 = vld [vmem:[%s320 + $0xe0] sm:$0xff]
        %v664 = vld [vmem:[%s320 + $0xe8] sm:$0xff]
        %v665 = vld [vmem:[%s320 + $0xf0] sm:$0xff]
        %v666 = vld [vmem:[%s320 + $0xf8] sm:$0xff]
        %v667 = vld [vmem:[%s320 + $0x100] sm:$0xff]
        %v668 = vld [vmem:[%s320 + $0x108] sm:$0xff]
        %v669 = vld [vmem:[%s320 + $0x110] sm:$0xff]
        %v670 = vld [vmem:[%s320 + $0x118] sm:$0xff]
        %v671 = vld [vmem:[%s320 + $0x120] sm:$0xff]
        %v672 = vld [vmem:[%s320 + $0x128] sm:$0xff]
        %v673 = vld [vmem:[%s320 + $0x130] sm:$0xff]
        %v674 = vld [vmem:[%s320 + $0x138] sm:$0xff]
        %v675 = vld [vmem:[%s320 + $0x140] sm:$0xff]
        %v676 = vld [vmem:[%s320 + $0x148] sm:$0xff]
        %v677 = vld [vmem:[%s320 + $0x150] sm:$0xff]
        %v678 = vld [vmem:[%s320 + $0x158] sm:$0xff]
        %v679 = vld [vmem:[%s320 + $0x160] sm:$0xff]
        %v680 = vld [vmem:[%s320 + $0x168] sm:$0xff]
        %v681 = vld [vmem:[%s320 + $0x170] sm:$0xff]
        %v682 = vld [vmem:[%s320 + $0x178] sm:$0xff]
        %v683 = vld [vmem:[%s320 + $0x180] sm:$0xff]
        %v684 = vld [vmem:[%s320 + $0x188] sm:$0xff]
        %v685 = vld [vmem:[%s320 + $0x190] sm:$0xff]
        %v686 = vld [vmem:[%s320 + $0x198] sm:$0xff]
        %v687 = vld [vmem:[%s320 + $0x1a0] sm:$0xff]
        %v688 = vld [vmem:[%s320 + $0x1a8] sm:$0xff]
        %v689 = vld [vmem:[%s320 + $0x1b0] sm:$0xff]
        %v690 = vld [vmem:[%s320 + $0x1b8] sm:$0xff]
        %v691 = vld [vmem:[%s320 + $0x1c0] sm:$0xff]
        %v692 = vld [vmem:[%s320 + $0x1c8] sm:$0xff]
        %v693 = vld [vmem:[%s320 + $0x1d0] sm:$0xff]
        %v694 = vld [vmem:[%s320 + $0x1d8] sm:$0xff]
        %v695 = vld [vmem:[%s320 + $0x1e0] sm:$0xff]
        %v696 = vld [vmem:[%s320 + $0x1e8] sm:$0xff]
        %v697 = vld [vmem:[%s320 + $0x1f0] sm:$0xff]
        %v698 = vld [vmem:[%s320 + $0x1f8] sm:$0xff]
        %v699 = vsel %vm627, %v635, 0.0
        %v700 = vsel %vm628, %v636, 0.0
        %v701 = vsel %vm629, %v637, 0.0
        %v702 = vsel %vm630, %v638, 0.0
        %v703 = vsel %vm627, %v639, 0.0
        %v704 = vsel %vm628, %v640, 0.0
        %v705 = vsel %vm629, %v641, 0.0
        %v706 = vsel %vm630, %v642, 0.0
        %v707 = vsel %vm627, %v643, 0.0
        %v708 = vsel %vm628, %v644, 0.0
        %v709 = vsel %vm629, %v645, 0.0
        %v710 = vsel %vm630, %v646, 0.0
        %v711 = vsel %vm627, %v647, 0.0
        %v712 = vsel %vm628, %v648, 0.0
        %v713 = vsel %vm629, %v649, 0.0
        %v714 = vsel %vm630, %v650, 0.0
        %v715 = vsel %vm627, %v651, 0.0
        %v716 = vsel %vm628, %v652, 0.0
        %v717 = vsel %vm629, %v653, 0.0
        %v718 = vsel %vm630, %v654, 0.0
        %v719 = vsel %vm627, %v655, 0.0
        %v720 = vsel %vm628, %v656, 0.0
        %v721 = vsel %vm629, %v657, 0.0
        %v722 = vsel %vm630, %v658, 0.0
        %v723 = vsel %vm627, %v659, 0.0
        %v724 = vsel %vm628, %v660, 0.0
        %v725 = vsel %vm629, %v661, 0.0
        %v726 = vsel %vm630, %v662, 0.0
        %v727 = vsel %vm627, %v663, 0.0
        %v728 = vsel %vm628, %v664, 0.0
        %v729 = vsel %vm629, %v665, 0.0
        %v730 = vsel %vm630, %v666, 0.0
        %v731 = vsel %vm627, %v667, 0.0
        %v732 = vsel %vm628, %v668, 0.0
        %v733 = vsel %vm629, %v669, 0.0
        %v734 = vsel %vm630, %v670, 0.0
        %v735 = vsel %vm627, %v671, 0.0
        %v736 = vsel %vm628, %v672, 0.0
        %v737 = vsel %vm629, %v673, 0.0
        %v738 = vsel %vm630, %v674, 0.0
        %v739 = vsel %vm627, %v675, 0.0
        %v740 = vsel %vm628, %v676, 0.0
        %v741 = vsel %vm629, %v677, 0.0
        %v742 = vsel %vm630, %v678, 0.0
        %v743 = vsel %vm627, %v679, 0.0
        %v744 = vsel %vm628, %v680, 0.0
        %v745 = vsel %vm629, %v681, 0.0
        %v746 = vsel %vm630, %v682, 0.0
        %v747 = vsel %vm627, %v683, 0.0
        %v748 = vsel %vm628, %v684, 0.0
        %v749 = vsel %vm629, %v685, 0.0
        %v750 = vsel %vm630, %v686, 0.0
        %v751 = vsel %vm627, %v687, 0.0
        %v752 = vsel %vm628, %v688, 0.0
        %v753 = vsel %vm629, %v689, 0.0
        %v754 = vsel %vm630, %v690, 0.0
        %v755 = vsel %vm627, %v691, 0.0
        %v756 = vsel %vm628, %v692, 0.0
        %v757 = vsel %vm629, %v693, 0.0
        %v758 = vsel %vm630, %v694, 0.0
        %v759 = vsel %vm627, %v695, 0.0
        %v760 = vsel %vm628, %v696, 0.0
        %v761 = vsel %vm629, %v697, 0.0
        %v762 = vsel %vm630, %v698, 0.0
        %763 = vmatprep.subr.mxu0 %v760
        %764 = vmatpush1.xpose.msra.mxu0 %v759
        %765 = vmatprep.subr.mxu0 %v756
        %766 = vmatpush1.xpose.msra.mxu0 %v755
        %767 = vmatprep.subr.mxu0 %v752
        %768 = vmatpush1.xpose.msra.mxu0 %v751
        %769 = vmatprep.subr.mxu0 %v748
        %770 = vmatpush1.xpose.msra.mxu0 %v747
        %771 = vmatprep.subr.mxu0 %v744
        %772 = vmatpush1.xpose.msra.mxu0 %v743
        %773 = vmatprep.subr.mxu0 %v740
        %774 = vmatpush1.xpose.msra.mxu0 %v739
        %775 = vmatprep.subr.mxu0 %v736
        %776 = vmatpush1.xpose.msra.mxu0 %v735
        %777 = vmatprep.subr.mxu0 %v732
        %778 = vmatpush1.xpose.msra.mxu0 %v731
        %779 = vmatprep.subr.mxu0 %v728
        %780 = vmatpush1.xpose.msra.mxu0 %v727
        %781 = vmatprep.subr.mxu0 %v724
        %782 = vmatpush1.xpose.msra.mxu0 %v723
        %783 = vmatprep.subr.mxu0 %v720
        %784 = vmatpush1.xpose.msra.mxu0 %v719
        %785 = vmatprep.subr.mxu0 %v716
        %786 = vmatpush1.xpose.msra.mxu0 %v715
        %787 = vmatprep.subr.mxu0 %v712
        %788 = vmatpush1.xpose.msra.mxu0 %v711
        %789 = vmatprep.subr.mxu0 %v708
        %790 = vmatpush1.xpose.msra.mxu0 %v707
        %791 = vmatprep.subr.mxu0 %v704
        %792 = vmatpush1.xpose.msra.mxu0 %v703
        %793 = vmatprep.subr.mxu0 %v700
        %794 = vmatpush1.xpose.msra.mxu0 %v699
        %795 = vmatprep.subr.mxu0 0.0
        %796 = vmatpush2.xpose.msra.mxu0 0.0
        %797 = vmatprep.subr.mxu0 0.0
        %798 = vmatpush2.xpose.msra.mxu0 0.0
        %799 = vmatprep.subr.mxu0 0.0
        %800 = vmatpush2.xpose.msra.mxu0 0.0
        %801 = vmatprep.subr.mxu0 0.0
        %802 = vmatpush2.xpose.msra.mxu0 0.0
        %803 = vmatprep.subr.mxu0 0.0
        %804 = vmatpush2.xpose.msra.mxu0 0.0
        %805 = vmatprep.subr.mxu0 0.0
        %806 = vmatpush2.xpose.msra.mxu0 0.0
        %807 = vmatprep.subr.mxu0 0.0
        %808 = vmatpush2.xpose.msra.mxu0 0.0
        %809 = vmatprep.subr.mxu0 0.0
        %810 = vmatpush2.xpose.msra.mxu0 0.0
        %811 = vmatprep.subr.mxu0 0.0
        %812 = vmatpush2.xpose.msra.mxu0 0.0
        %813 = vmatprep.subr.mxu0 0.0
        %814 = vmatpush2.xpose.msra.mxu0 0.0
        %815 = vmatprep.subr.mxu0 0.0
        %816 = vmatpush2.xpose.msra.mxu0 0.0
        %817 = vmatprep.subr.mxu0 0.0
        %818 = vmatpush2.xpose.msra.mxu0 0.0
        %819 = vmatprep.subr.mxu0 0.0
        %820 = vmatpush2.xpose.msra.mxu0 0.0
        %821 = vmatprep.subr.mxu0 0.0
        %822 = vmatpush2.xpose.msra.mxu0 0.0
        %823 = vmatprep.subr.mxu0 0.0
        %824 = vmatpush2.xpose.msra.mxu0 0.0
        %825 = vmatprep.subr.mxu0 0.0
        %826 = vmatpush2.xpose.msra.mxu0 0.0
        %827 = vmatprep.mubr.f32.mxu0 %v632
        %828 = vmatmul.mubr.f32.gmra.mxu0 %v631
        %v829 = vpop.f32.mrf.mxu0
        %v830 = vadd.f32 0.0, %v829
        %v831 = vpop.f32.mrf.mxu0
        %832 = vdwg.mxu0
        %833 = vmatprep.subr.mxu0 %v762
        %834 = vmatpush1.xpose.msra.mxu0 %v761
        %835 = vmatprep.subr.mxu0 %v758
        %836 = vmatpush1.xpose.msra.mxu0 %v757
        %837 = vmatprep.subr.mxu0 %v754
        %838 = vmatpush1.xpose.msra.mxu0 %v753
        %839 = vmatprep.subr.mxu0 %v750
        %840 = vmatpush1.xpose.msra.mxu0 %v749
        %841 = vmatprep.subr.mxu0 %v746
        %842 = vmatpush1.xpose.msra.mxu0 %v745
        %843 = vmatprep.subr.mxu0 %v742
        %844 = vmatpush1.xpose.msra.mxu0 %v741
        %845 = vmatprep.subr.mxu0 %v738
        %846 = vmatpush1.xpose.msra.mxu0 %v737
        %847 = vmatprep.subr.mxu0 %v734
        %848 = vmatpush1.xpose.msra.mxu0 %v733
        %849 = vmatprep.subr.mxu0 %v730
        %850 = vmatpush1.xpose.msra.mxu0 %v729
        %851 = vmatprep.subr.mxu0 %v726
        %852 = vmatpush1.xpose.msra.mxu0 %v725
        %853 = vmatprep.subr.mxu0 %v722
        %854 = vmatpush1.xpose.msra.mxu0 %v721
        %855 = vmatprep.subr.mxu0 %v718
        %856 = vmatpush1.xpose.msra.mxu0 %v717
        %857 = vmatprep.subr.mxu0 %v714
        %858 = vmatpush1.xpose.msra.mxu0 %v713
        %859 = vmatprep.subr.mxu0 %v710
        %860 = vmatpush1.xpose.msra.mxu0 %v709
        %861 = vmatprep.subr.mxu0 %v706
        %862 = vmatpush1.xpose.msra.mxu0 %v705
        %863 = vmatprep.subr.mxu0 %v702
        %864 = vmatpush1.xpose.msra.mxu0 %v701
        %865 = vmatprep.subr.mxu0 0.0
        %866 = vmatpush2.xpose.msra.mxu0 0.0
        %867 = vmatprep.subr.mxu0 0.0
        %868 = vmatpush2.xpose.msra.mxu0 0.0
        %869 = vmatprep.subr.mxu0 0.0
        %870 = vmatpush2.xpose.msra.mxu0 0.0
        %871 = vmatprep.subr.mxu0 0.0
        %872 = vmatpush2.xpose.msra.mxu0 0.0
        %873 = vmatprep.subr.mxu0 0.0
        %874 = vmatpush2.xpose.msra.mxu0 0.0
        %875 = vmatprep.subr.mxu0 0.0
        %876 = vmatpush2.xpose.msra.mxu0 0.0
        %877 = vmatprep.subr.mxu0 0.0
        %878 = vmatpush2.xpose.msra.mxu0 0.0
        %879 = vmatprep.subr.mxu0 0.0
        %880 = vmatpush2.xpose.msra.mxu0 0.0
        %881 = vmatprep.subr.mxu0 0.0
        %882 = vmatpush2.xpose.msra.mxu0 0.0
        %883 = vmatprep.subr.mxu0 0.0
        %884 = vmatpush2.xpose.msra.mxu0 0.0
        %885 = vmatprep.subr.mxu0 0.0
        %886 = vmatpush2.xpose.msra.mxu0 0.0
        %887 = vmatprep.subr.mxu0 0.0
        %888 = vmatpush2.xpose.msra.mxu0 0.0
        %889 = vmatprep.subr.mxu0 0.0
        %890 = vmatpush2.xpose.msra.mxu0 0.0
        %891 = vmatprep.subr.mxu0 0.0
        %892 = vmatpush2.xpose.msra.mxu0 0.0
        %893 = vmatprep.subr.mxu0 0.0
        %894 = vmatpush2.xpose.msra.mxu0 0.0
        %895 = vmatprep.subr.mxu0 0.0
        %896 = vmatpush2.xpose.msra.mxu0 0.0
        %897 = vmatprep.mubr.f32.mxu0 %v634
        %898 = vmatmul.mubr.f32.gmra.mxu0 %v633
        %v899 = vpop.f32.mrf.mxu0
        %v900 = vadd.f32 %v830, %v899
        %v901 = vpop.f32.mrf.mxu0
        %902 = vdwg.mxu0
        %p903 = scmp.eq.s32.totalorder %s33, 0
        // Predicated region
        $region57: #{tpu_custom_call.1} parent=39 // pred_check
          %p904 = pneg %p903
        $region58: #{tpu_custom_call.1} parent=39 // pred_check_branch
          %906 = sbr.rel (%p904) target = $region60
        $region59: #{tpu_custom_call.1} parent=39 // pred_region
          %907 = vst [vmem:[#allocation2] sm:$0xff] %v900
        $region60: #{tpu_custom_call.1} parent=39 // pred_fallthru
          _
        %p908 = scmp.gt.s32.totalorder %s33, 0
        // Predicated region
        $region61: #{tpu_custom_call.1} parent=39 // pred_check
          %p909 = pneg %p908
        $region62: #{tpu_custom_call.1} parent=39 // pred_check_branch
          %911 = sbr.rel (%p909) target = $region64
        $region63: #{tpu_custom_call.1} parent=39 // pred_region
          %v912 = vld [vmem:[#allocation2] sm:$0xff]
          %v913 = vadd.f32 %v912, %v900
          %914 = vst [vmem:[#allocation2] sm:$0xff] %v913
        $region64: #{tpu_custom_call.1} parent=39 // pred_fallthru
          _
        %p915 = scmp.eq.s32.totalorder %s33, 1
        // Predicated region
        $region65: #{tpu_custom_call.1} parent=39 // pred_check
          %p916 = pneg %p915
        $region66: #{tpu_custom_call.1} parent=39 // pred_check_branch
          %918 = sbr.rel (%p916) target = $region68
        $region67: #{tpu_custom_call.1} parent=39 // pred_region
          %v919 = vld [vmem:[#allocation2] sm:$0xff]
          %v920 = vld [vmem:[%s4] sm:$0x1]
          %v922 = vlaneseq
          %v923 = vshrl.u32 %v922, 7
          %v924 = vsub.s32 0, %v923
          %v925 = vrot.slane %v920, %v924
          %v927 = vadd.f32 %v919, %v925
          %928 = vst [vmem:[%s356] sm:$0xff] %v927
        $region68: #{tpu_custom_call.1} parent=39 // pred_fallthru
          _
        %s929 = sand.u32 %s168, 1
        %s930 = scalar_lea.sflag [#allocation5], %s929
        %s931 = sand.u32 %s168, 1
        %s932 = smul.addr %s931, 8
        %s933 = scalar_lea.vmem [#allocation11], %s932
        // Predicated region
        $region69: #{tpu_custom_call.1} parent=39 // pred_check
          %p934 = pneg %p178
        $region70: #{tpu_custom_call.1} parent=39 // pred_check_branch
          %936 = sbr.rel (%p934) target = $region72
        $region71: #{tpu_custom_call.1} parent=39 // pred_region
          %s938 = ssub.s32 128, 128
          %939 = vsyncadd %s930, %s938
          %s940 = smul.addr %s32, 128
          %s941 = scalar_lea.hbm %s5, %s940
          %s943 = sshll.u32 %s933, 4
          %s944 = int_to_ptr.vmem [resolvable:$true] %s943
          %946 = dma.vmem_to_hbm [thread:$0]  %s944, 128, %s941, %s930
        $region72: #{tpu_custom_call.1} parent=39 // pred_fallthru
          _
      $region40: #{tpu_custom_call.1} parent=5 // pred_fallthru
        _
      %p947 = scmp.le.s32.totalorder 2, %s23
      // Predicated region
      $region73: #{tpu_custom_call.1} parent=5 // pred_check
        %p948 = pneg %p947
      $region74: #{tpu_custom_call.1} parent=5 // pred_check_branch
        %950 = sbr.rel (%p948) target = $region76
      $region75: #{tpu_custom_call.1} parent=5 // pred_region
        %s951 = ssub.s32 %s23, 2
        // Predicated region
        $region77: #{tpu_custom_call.1} parent=75 // pred_check
          %p952 = pneg %p184
        $region78: #{tpu_custom_call.1} parent=75 // pred_check_branch
          %954 = sbr.rel (%p952) target = $region80
        $region79: #{tpu_custom_call.1} parent=75 // pred_region
          %s955 = sand.u32 %s169, 1
          %s956 = scalar_lea.sflag [#allocation5], %s955
          %s957 = sand.u32 %s169, 1
          %s958 = smul.addr %s957, 8
          %s959 = scalar_lea.vmem [#allocation11], %s958
          %960 = dma.done %s956, 128
        $region80: #{tpu_custom_call.1} parent=75 // pred_fallthru
          _
      $region76: #{tpu_custom_call.1} parent=5 // pred_fallthru
        _
    $region6: #{tpu_custom_call.1} parent=1 // loop_footer
      %s27 = sadd.s32 1, %s23
    $region7: #{tpu_custom_call.1} parent=1 // loop_footer_branch
      %22 = sbr.rel target = $region3
    $region8: #{tpu_custom_call.1} parent=1 // loop_exit
      _
    %961 = vsyncpa [#allocation4], 1
    %s962 = scalar_lea.sflag [#allocation4], 1
    %963 = vsyncpa %s962, 1
    %964 = vsyncpa [#allocation7], 1
    %s965 = scalar_lea.sflag [#allocation7], 1
    %966 = vsyncpa %s965, 1
    %967 = vsyncpa [#allocation10], 1
    %s968 = scalar_lea.sflag [#allocation10], 1
    %969 = vsyncpa %s968, 1
    %970 = vsyncpa [#allocation5], 1
    %s971 = scalar_lea.sflag [#allocation5], 1
    %972 = vsyncpa %s971, 1

</llo_original>
